<compile_context>
chip_gen: v7x
topology: tpu7x:2x2x1
jax: 0.10.0
libtpu: 0.0.40
codegen_flags: <defaults>
</compile_context>

<pallas_src>
import math
import functools

import jax
import jax.numpy as jnp
from jax.experimental import pallas as pl
from jax.experimental.pallas import tpu as pltpu


# ---------------------------------------------------------------------------
# Kernel 1: fused Q/K/V projections (lane-dense GEMMs, N = D).
# ---------------------------------------------------------------------------
def _qkv_proj_kernel(q_in, k_in, v_in, wq, bq, wk, bk, wv, bv,
                     q_out, k_out, v_out):
    bf16 = jnp.bfloat16
    f32 = jnp.float32

    def proj(x_ref, w_ref, b_ref, o_ref):
        # f32 activation tile read once from HBM, cast in-register.
        x = x_ref[0].astype(bf16)                                    # (ts, D)
        y = jnp.dot(x, w_ref[...], preferred_element_type=f32)       # full-width N = D
        y = y + b_ref[...]                                           # bias in f32
        o_ref[0] = y.astype(o_ref.dtype)                             # bf16, lane-dense store

    proj(q_in, wq, bq, q_out)
    proj(k_in, wk, bk, k_out)
    proj(v_in, wv, bv, v_out)


# ---------------------------------------------------------------------------
# Kernel 2: flash attention (online softmax over KV tiles) + output projection.
# ---------------------------------------------------------------------------
def _flash_attn_kernel(q_ref, k_ref, v_ref, wo_ref, bo_ref, out_ref,
                       m_sc, l_sc, acc_sc, *, num_head, d_k, scale):
    bf16 = jnp.bfloat16
    f32 = jnp.float32
    H, dk = num_head, d_k
    kv = pl.program_id(2)

    @pl.when(kv == 0)
    def _():
        m_sc[...] = jnp.full(m_sc.shape, -jnp.inf, f32)
        l_sc[...] = jnp.zeros(l_sc.shape, f32)
        acc_sc[...] = jnp.zeros(acc_sc.shape, f32)

    def split_heads(x2d):
        # (t, D) -> (H, t, dk); head split lands on the XLU slot (MXU is binding).
        t = x2d.shape[0]
        return jnp.swapaxes(x2d.reshape(t, H, dk), 0, 1)

    qh = split_heads(q_ref[0])       # (H, tq, dk) bf16
    kh = split_heads(k_ref[0])       # (H, tk, dk) bf16
    vh = split_heads(v_ref[0])       # (H, tk, dk) bf16

    # Per-head scaled scores for this KV tile (bf16 MXU inputs, f32 accumulation).
    s = jnp.einsum("hqe,hke->hqk", qh, kh,
                   preferred_element_type=f32) * scale               # (H, tq, tk) f32

    # Online-softmax update (f32 statistics).
    m_prev = m_sc[...]
    m_new = jnp.maximum(m_prev, s.max(axis=-1, keepdims=True))
    alpha = jnp.exp(m_prev - m_new)
    p = jnp.exp(s - m_new)
    l_sc[...] = alpha * l_sc[...] + p.sum(axis=-1, keepdims=True)
    acc_sc[...] = alpha * acc_sc[...] + jnp.einsum(
        "hqk,hke->hqe", p.astype(bf16), vh, preferred_element_type=f32)
    m_sc[...] = m_new

    @pl.when(kv == pl.num_programs(2) - 1)
    def _():
        tq = acc_sc.shape[1]
        # Normalize (EUP reciprocal, free slot) and merge heads back onto the
        # lane axis (head-major, matching torch's transpose(1,2).view(...)).
        ctx = acc_sc[...] * pl.reciprocal(l_sc[...], approx=True)    # (H, tq, dk) f32
        ctx2d = jnp.swapaxes(ctx, 0, 1).reshape(tq, H * dk).astype(bf16)
        # Heads + d_k contracted in a single lane-dense GEMM against W_o^T.
        out = jnp.dot(ctx2d, wo_ref[...], preferred_element_type=f32) + bo_ref[...]
        out_ref[0] = out.astype(out_ref.dtype)


# ---------------------------------------------------------------------------
# Wrapper.
# ---------------------------------------------------------------------------
def _pick_tile(n, candidates=(256, 128)):
    for c in candidates:
        if n % c == 0:
            return c
    return n  # small / ragged: single full-extent tile (satisfies the full-dim rule)


def _vmem_limit(tile_bytes):
    # Headroom for double buffering / intermediates; clamp to a safe range.
    return int(min(64 * 2 ** 20, max(4 * 2 ** 20, 2 * int(tile_bytes))))


def multi_head_attention(query, key, value, params, *, num_head, mask=None):
    """params: dict with wq,bq,wk,bk,wv,bv,wo,bo in PyTorch Linear layout W:(out,in)."""
    assert mask is None  # TODO(synk): mask not implemented.
    B, S, D = query.shape
    H = num_head
    assert D % H == 0
    dk = D // H
    bf16, f32 = jnp.bfloat16, jnp.float32

    # One-time weight layout work (hoist to parameter-load time in a real model):
    # pre-transpose to MXU-friendly (in, out) and pre-cast weights to bf16
    # (weights are reused every grid step; activations stay f32 in HBM).
    wq_t = params["wq"].T.astype(bf16)
    wk_t = params["wk"].T.astype(bf16)
    wv_t = params["wv"].T.astype(bf16)
    wo_t = params["wo"].T.astype(bf16)
    bq = params["bq"].reshape(1, D).astype(f32)
    bk = params["bk"].reshape(1, D).astype(f32)
    bv = params["bv"].reshape(1, D).astype(f32)
    bo = params["bo"].reshape(1, D).astype(f32)

    ts = _pick_tile(S)   # projection sequence tile
    tq = _pick_tile(S)   # query tile (parallel grid axis)
    tk = _pick_tile(S)   # kv tile (arbitrary, last grid axis)

    # ---------------- Kernel 1: Q/K/V projections ----------------
    x_spec = pl.BlockSpec((1, ts, D), lambda b, si: (b, si, 0))
    w_spec = pl.BlockSpec((D, D), lambda b, si: (0, 0))
    b_spec = pl.BlockSpec((1, D), lambda b, si: (0, 0))
    p_out_spec = pl.BlockSpec((1, ts, D), lambda b, si: (b, si, 0))

    proj_tile_bytes = (2 * 3 * ts * D * 4            # f32 input tiles (double-buffered)
                       + 3 * (D * D * 2 + D * 4)     # weights + biases
                       + 2 * 3 * ts * D * 2)         # bf16 output tiles (double-buffered)

    q_p, k_p, v_p = pl.pallas_call(
        _qkv_proj_kernel,
        out_shape=tuple(jax.ShapeDtypeStruct((B, S, D), bf16) for _ in range(3)),
        grid_spec=pltpu.PrefetchScalarGridSpec(
            num_scalar_prefetch=0,
            grid=(B, S // ts),
            in_specs=[x_spec, x_spec, x_spec,
                      w_spec, b_spec, w_spec, b_spec, w_spec, b_spec],
            out_specs=[p_out_spec, p_out_spec, p_out_spec],
        ),
        compiler_params=pltpu.CompilerParams(
            dimension_semantics=("parallel", "parallel"),
            vmem_limit_bytes=_vmem_limit(proj_tile_bytes)),
    )(query, key, value, wq_t, bq, wk_t, bk, wv_t, bv)

    # ---------------- Kernel 2: flash attention + output projection ----------------
    q_spec = pl.BlockSpec((1, tq, D), lambda b, qi, ki: (b, qi, 0))
    kv_spec = pl.BlockSpec((1, tk, D), lambda b, qi, ki: (b, ki, 0))
    wo_spec = pl.BlockSpec((D, D), lambda b, qi, ki: (0, 0))
    bo_spec = pl.BlockSpec((1, D), lambda b, qi, ki: (0, 0))
    o_spec = pl.BlockSpec((1, tq, D), lambda b, qi, ki: (b, qi, 0))

    attn_tile_bytes = (2 * (tq * D * 2 + 2 * tk * D * 2)        # q/k/v bf16 tiles (double-buffered)
                       + D * D * 2 + D * 4                      # wo + bo
                       + 2 * tq * D * 4                         # output tile
                       + (2 * H * tq + H * tq * dk) * 4         # m / l / acc scratch
                       + 3 * H * tq * tk * 4 + 3 * H * tq * dk * 4)  # in-flight intermediates

    attn_kernel = functools.partial(
        _flash_attn_kernel, num_head=H, d_k=dk, scale=1.0 / math.sqrt(dk))

    out = pl.pallas_call(
        attn_kernel,
        out_shape=jax.ShapeDtypeStruct((B, S, D), query.dtype),
        grid_spec=pltpu.PrefetchScalarGridSpec(
            num_scalar_prefetch=0,
            grid=(B, S // tq, S // tk),
            in_specs=[q_spec, kv_spec, kv_spec, wo_spec, bo_spec],
            out_specs=o_spec,
            scratch_shapes=[pltpu.VMEM((H, tq, 1), f32),     # m
                            pltpu.VMEM((H, tq, 1), f32),     # l
                            pltpu.VMEM((H, tq, dk), f32)],   # acc
        ),
        compiler_params=pltpu.CompilerParams(
            dimension_semantics=("parallel", "parallel", "arbitrary"),
            vmem_limit_bytes=_vmem_limit(attn_tile_bytes)),
    )(q_p, k_p, v_p, wo_t, bo)

    return out


# ---------------------------------------------------------------------------
# Pure-JAX f32 reference (mask=None, eval-mode dropout) mirroring PyTorch.
# ---------------------------------------------------------------------------
def _reference_mha(query, key, value, params, *, num_head):
    B, S, D = query.shape
    d_k = D // num_head

    def lin(x, w, b):
        return x @ w.T + b

    q = lin(query, params["wq"], params["bq"]).reshape(B, S, num_head, d_k).transpose(0, 2, 1, 3)
    k = lin(key, params["wk"], params["bk"]).reshape(B, S, num_head, d_k).transpose(0, 2, 1, 3)
    v = lin(value, params["wv"], params["bv"]).reshape(B, S, num_head, d_k).transpose(0, 2, 1, 3)

    scores = jnp.einsum("bhqd,bhkd->bhqk", q, k) / math.sqrt(d_k)
    p = jax.nn.softmax(scores, axis=-1)
    x = jnp.einsum("bhqk,bhkd->bhqd", p, v)
    x = x.transpose(0, 2, 1, 3).reshape(B, S, D)
    return lin(x, params["wo"], params["bo"])


if __name__ == "__main__":
    B, S, D, H = 2, 8, 32, 4  # batch, seq, d_model, num_head
    key0 = jax.random.PRNGKey(0)
    keys = jax.random.split(key0, 12)

    # Deterministic synthetic parameters (PyTorch Linear layout: (out, in)).
    params = {
        "wq": jax.random.normal(keys[0], (D, D), jnp.float32) * 0.05,
        "bq": jax.random.normal(keys[1], (D,), jnp.float32) * 0.05,
        "wk": jax.random.normal(keys[2], (D, D), jnp.float32) * 0.05,
        "bk": jax.random.normal(keys[3], (D,), jnp.float32) * 0.05,
        "wv": jax.random.normal(keys[4], (D, D), jnp.float32) * 0.05,
        "bv": jax.random.normal(keys[5], (D,), jnp.float32) * 0.05,
        "wo": jax.random.normal(keys[6], (D, D), jnp.float32) * 0.05,
        "bo": jax.random.normal(keys[7], (D,), jnp.float32) * 0.05,
    }

    query = jax.random.normal(keys[8], (B, S, D), jnp.float32)
    key_x = jax.random.normal(keys[9], (B, S, D), jnp.float32)
    value = jax.random.normal(keys[10], (B, S, D), jnp.float32)

    out = multi_head_attention(query, key_x, value, params, num_head=H)
    out = jax.block_until_ready(out)

    ref = _reference_mha(query, key_x, value, params, num_head=H)
    assert out.shape == (B, S, D)
    # bf16 MXU operands (f32 accumulation) + approx reciprocal -> bf16 tolerance.
    assert jnp.allclose(out, ref, atol=2e-2, rtol=2e-2), "mismatch vs reference"

    print("KERNEL_OK")
</pallas_src>

<mosaic_0001>
module attributes {stable_mosaic.version = 11 : i64} {
  func.func @_qkv_proj_kernel(%arg0: i32, %arg1: i32, %arg2: memref<1x8x32xf32, #tpu.memory_space<vmem>>, %arg3: memref<1x8x32xf32, #tpu.memory_space<vmem>>, %arg4: memref<1x8x32xf32, #tpu.memory_space<vmem>>, %arg5: memref<32x32xbf16, #tpu.memory_space<vmem>>, %arg6: memref<1x32xf32, #tpu.memory_space<vmem>>, %arg7: memref<32x32xbf16, #tpu.memory_space<vmem>>, %arg8: memref<1x32xf32, #tpu.memory_space<vmem>>, %arg9: memref<32x32xbf16, #tpu.memory_space<vmem>>, %arg10: memref<1x32xf32, #tpu.memory_space<vmem>>, %arg11: memref<1x8x32xbf16, #tpu.memory_space<vmem>>, %arg12: memref<1x8x32xbf16, #tpu.memory_space<vmem>>, %arg13: memref<1x8x32xbf16, #tpu.memory_space<vmem>>) attributes {dimension_semantics = [#tpu.dimension_semantics<parallel>, #tpu.dimension_semantics<parallel>], iteration_bounds = array<i64: 2, 1>, scalar_prefetch = 0 : i64, scratch_operands = 0 : i64, tpu.core_type = #tpu.core_type<tc>, window_params = [{transform_indices = @transform_0, window_bounds = array<i64: 1, 8, 32>}, {transform_indices = @transform_1, window_bounds = array<i64: 1, 8, 32>}, {transform_indices = @transform_2, window_bounds = array<i64: 1, 8, 32>}, {pipeline_mode = #tpu.pipeline_mode<synchronous>, transform_indices = @transform_3, window_bounds = array<i64: 32, 32>}, {pipeline_mode = #tpu.pipeline_mode<synchronous>, transform_indices = @transform_4, window_bounds = array<i64: 1, 32>}, {pipeline_mode = #tpu.pipeline_mode<synchronous>, transform_indices = @transform_5, window_bounds = array<i64: 32, 32>}, {pipeline_mode = #tpu.pipeline_mode<synchronous>, transform_indices = @transform_6, window_bounds = array<i64: 1, 32>}, {pipeline_mode = #tpu.pipeline_mode<synchronous>, transform_indices = @transform_7, window_bounds = array<i64: 32, 32>}, {pipeline_mode = #tpu.pipeline_mode<synchronous>, transform_indices = @transform_8, window_bounds = array<i64: 1, 32>}, {transform_indices = @transform_9, window_bounds = array<i64: 1, 8, 32>}, {transform_indices = @transform_10, window_bounds = array<i64: 1, 8, 32>}, {transform_indices = @transform_11, window_bounds = array<i64: 1, 8, 32>}]} {
    %c0 = arith.constant 0 : index
    %c0_0 = arith.constant 0 : index
    %c0_1 = arith.constant 0 : index
    %0 = vector.load %arg2[%c0, %c0_0, %c0_1] : memref<1x8x32xf32, #tpu.memory_space<vmem>>, vector<1x8x32xf32>
    %1 = vector.shape_cast %0 : vector<1x8x32xf32> to vector<8x32xf32>
    %2 = arith.truncf %1 : vector<8x32xf32> to vector<8x32xbf16>
    %c0_2 = arith.constant 0 : index
    %c0_3 = arith.constant 0 : index
    %3 = vector.load %arg5[%c0_2, %c0_3] : memref<32x32xbf16, #tpu.memory_space<vmem>>, vector<32x32xbf16>
    %cst = arith.constant dense<0.000000e+00> : vector<8x32xf32>
    %4 = tpu.matmul %2, %3, %cst {dimension_numbers = #tpu.dot_dimension_numbers<[1], [0], [0], [1], [0, 0, 1, 1], [], []>} : vector<8x32xbf16>, vector<32x32xbf16>, vector<8x32xf32> -> vector<8x32xf32>
    %c0_4 = arith.constant 0 : index
    %c0_5 = arith.constant 0 : index
    %5 = vector.load %arg6[%c0_4, %c0_5] : memref<1x32xf32, #tpu.memory_space<vmem>>, vector<1x32xf32>
    %6 = vector.broadcast %5 : vector<1x32xf32> to vector<8x32xf32>
    %7 = arith.addf %4, %6 : vector<8x32xf32>
    %8 = arith.truncf %7 : vector<8x32xf32> to vector<8x32xbf16>
    %c0_6 = arith.constant 0 : index
    %c0_7 = arith.constant 0 : index
    %c0_8 = arith.constant 0 : index
    %9 = vector.load %arg11[%c0_6, %c0_7, %c0_8] : memref<1x8x32xbf16, #tpu.memory_space<vmem>>, vector<1x8x32xbf16>
    %10 = vector.shape_cast %9 : vector<1x8x32xbf16> to vector<8x32xbf16>
    %11 = vector.shape_cast %8 : vector<8x32xbf16> to vector<1x8x32xbf16>
    tpu.vector_store %arg11[%c0_6, %c0_7, %c0_8], %11 {strides = array<i32>} : memref<1x8x32xbf16, #tpu.memory_space<vmem>>, vector<1x8x32xbf16>,
    %c0_9 = arith.constant 0 : index
    %c0_10 = arith.constant 0 : index
    %c0_11 = arith.constant 0 : index
    %12 = vector.load %arg3[%c0_9, %c0_10, %c0_11] : memref<1x8x32xf32, #tpu.memory_space<vmem>>, vector<1x8x32xf32>
    %13 = vector.shape_cast %12 : vector<1x8x32xf32> to vector<8x32xf32>
    %14 = arith.truncf %13 : vector<8x32xf32> to vector<8x32xbf16>
    %c0_12 = arith.constant 0 : index
    %c0_13 = arith.constant 0 : index
    %15 = vector.load %arg7[%c0_12, %c0_13] : memref<32x32xbf16, #tpu.memory_space<vmem>>, vector<32x32xbf16>
    %cst_14 = arith.constant dense<0.000000e+00> : vector<8x32xf32>
    %16 = tpu.matmul %14, %15, %cst_14 {dimension_numbers = #tpu.dot_dimension_numbers<[1], [0], [0], [1], [0, 0, 1, 1], [], []>} : vector<8x32xbf16>, vector<32x32xbf16>, vector<8x32xf32> -> vector<8x32xf32>
    %c0_15 = arith.constant 0 : index
    %c0_16 = arith.constant 0 : index
    %17 = vector.load %arg8[%c0_15, %c0_16] : memref<1x32xf32, #tpu.memory_space<vmem>>, vector<1x32xf32>
    %18 = vector.broadcast %17 : vector<1x32xf32> to vector<8x32xf32>
    %19 = arith.addf %16, %18 : vector<8x32xf32>
    %20 = arith.truncf %19 : vector<8x32xf32> to vector<8x32xbf16>
    %c0_17 = arith.constant 0 : index
    %c0_18 = arith.constant 0 : index
    %c0_19 = arith.constant 0 : index
    %21 = vector.load %arg12[%c0_17, %c0_18, %c0_19] : memref<1x8x32xbf16, #tpu.memory_space<vmem>>, vector<1x8x32xbf16>
    %22 = vector.shape_cast %21 : vector<1x8x32xbf16> to vector<8x32xbf16>
    %23 = vector.shape_cast %20 : vector<8x32xbf16> to vector<1x8x32xbf16>
    tpu.vector_store %arg12[%c0_17, %c0_18, %c0_19], %23 {strides = array<i32>} : memref<1x8x32xbf16, #tpu.memory_space<vmem>>, vector<1x8x32xbf16>,
    %c0_20 = arith.constant 0 : index
    %c0_21 = arith.constant 0 : index
    %c0_22 = arith.constant 0 : index
    %24 = vector.load %arg4[%c0_20, %c0_21, %c0_22] : memref<1x8x32xf32, #tpu.memory_space<vmem>>, vector<1x8x32xf32>
    %25 = vector.shape_cast %24 : vector<1x8x32xf32> to vector<8x32xf32>
    %26 = arith.truncf %25 : vector<8x32xf32> to vector<8x32xbf16>
    %c0_23 = arith.constant 0 : index
    %c0_24 = arith.constant 0 : index
    %27 = vector.load %arg9[%c0_23, %c0_24] : memref<32x32xbf16, #tpu.memory_space<vmem>>, vector<32x32xbf16>
    %cst_25 = arith.constant dense<0.000000e+00> : vector<8x32xf32>
    %28 = tpu.matmul %26, %27, %cst_25 {dimension_numbers = #tpu.dot_dimension_numbers<[1], [0], [0], [1], [0, 0, 1, 1], [], []>} : vector<8x32xbf16>, vector<32x32xbf16>, vector<8x32xf32> -> vector<8x32xf32>
    %c0_26 = arith.constant 0 : index
    %c0_27 = arith.constant 0 : index
    %29 = vector.load %arg10[%c0_26, %c0_27] : memref<1x32xf32, #tpu.memory_space<vmem>>, vector<1x32xf32>
    %30 = vector.broadcast %29 : vector<1x32xf32> to vector<8x32xf32>
    %31 = arith.addf %28, %30 : vector<8x32xf32>
    %32 = arith.truncf %31 : vector<8x32xf32> to vector<8x32xbf16>
    %c0_28 = arith.constant 0 : index
    %c0_29 = arith.constant 0 : index
    %c0_30 = arith.constant 0 : index
    %33 = vector.load %arg13[%c0_28, %c0_29, %c0_30] : memref<1x8x32xbf16, #tpu.memory_space<vmem>>, vector<1x8x32xbf16>
    %34 = vector.shape_cast %33 : vector<1x8x32xbf16> to vector<8x32xbf16>
    %35 = vector.shape_cast %32 : vector<8x32xbf16> to vector<1x8x32xbf16>
    tpu.vector_store %arg13[%c0_28, %c0_29, %c0_30], %35 {strides = array<i32>} : memref<1x8x32xbf16, #tpu.memory_space<vmem>>, vector<1x8x32xbf16>,
    return
  }
  func.func @transform_0(%arg0: i32, %arg1: i32) -> (i32, i32, i32) {
    %c0_i32 = arith.constant 0 : i32
    %c0_i32_0 = arith.constant 0 : i32
    return %arg0, %arg1, %c0_i32 : i32, i32, i32
  }
  func.func @transform_1(%arg0: i32, %arg1: i32) -> (i32, i32, i32) {
    %c0_i32 = arith.constant 0 : i32
    %c0_i32_0 = arith.constant 0 : i32
    return %arg0, %arg1, %c0_i32 : i32, i32, i32
  }
  func.func @transform_2(%arg0: i32, %arg1: i32) -> (i32, i32, i32) {
    %c0_i32 = arith.constant 0 : i32
    %c0_i32_0 = arith.constant 0 : i32
    return %arg0, %arg1, %c0_i32 : i32, i32, i32
  }
  func.func @transform_3(%arg0: i32, %arg1: i32) -> (i32, i32) {
    %c0_i32 = arith.constant 0 : i32
    %c0_i32_0 = arith.constant 0 : i32
    %c0_i32_1 = arith.constant 0 : i32
    return %c0_i32, %c0_i32_0 : i32, i32
  }
  func.func @transform_4(%arg0: i32, %arg1: i32) -> (i32, i32) {
    %c0_i32 = arith.constant 0 : i32
    %c0_i32_0 = arith.constant 0 : i32
    %c0_i32_1 = arith.constant 0 : i32
    return %c0_i32, %c0_i32_0 : i32, i32
  }
  func.func @transform_5(%arg0: i32, %arg1: i32) -> (i32, i32) {
    %c0_i32 = arith.constant 0 : i32
    %c0_i32_0 = arith.constant 0 : i32
    %c0_i32_1 = arith.constant 0 : i32
    return %c0_i32, %c0_i32_0 : i32, i32
  }
  func.func @transform_6(%arg0: i32, %arg1: i32) -> (i32, i32) {
    %c0_i32 = arith.constant 0 : i32
    %c0_i32_0 = arith.constant 0 : i32
    %c0_i32_1 = arith.constant 0 : i32
    return %c0_i32, %c0_i32_0 : i32, i32
  }
  func.func @transform_7(%arg0: i32, %arg1: i32) -> (i32, i32) {
    %c0_i32 = arith.constant 0 : i32
    %c0_i32_0 = arith.constant 0 : i32
    %c0_i32_1 = arith.constant 0 : i32
    return %c0_i32, %c0_i32_0 : i32, i32
  }
  func.func @transform_8(%arg0: i32, %arg1: i32) -> (i32, i32) {
    %c0_i32 = arith.constant 0 : i32
    %c0_i32_0 = arith.constant 0 : i32
    %c0_i32_1 = arith.constant 0 : i32
    return %c0_i32, %c0_i32_0 : i32, i32
  }
  func.func @transform_9(%arg0: i32, %arg1: i32) -> (i32, i32, i32) {
    %c0_i32 = arith.constant 0 : i32
    %c0_i32_0 = arith.constant 0 : i32
    return %arg0, %arg1, %c0_i32 : i32, i32, i32
  }
  func.func @transform_10(%arg0: i32, %arg1: i32) -> (i32, i32, i32) {
    %c0_i32 = arith.constant 0 : i32
    %c0_i32_0 = arith.constant 0 : i32
    return %arg0, %arg1, %c0_i32 : i32, i32, i32
  }
  func.func @transform_11(%arg0: i32, %arg1: i32) -> (i32, i32, i32) {
    %c0_i32 = arith.constant 0 : i32
    %c0_i32_0 = arith.constant 0 : i32
    return %arg0, %arg1, %c0_i32 : i32, i32, i32
  }
}

</mosaic_0001>

<llo_original>
// kernel: tpu_custom_call.1
$region0: #{tpu_custom_call.1}
  #allocation0 [shape = 'u32[]', space=smem, size = 0x4, offset = 0x4, fixed_abs, tag = 'smem constant byte address 0x4 - core index']
  #allocation1 [shape = 'u32[144,128]{1,0:T(1,128)}', space=vmem, size = 0x12000, scoped, tag = 'internal scratch']
  %s0 = inlined_call_operand.hbm [shape: f32[2,8,32], index: 0, kind: input, shape index: {}]
  %s1 = inlined_call_operand.hbm [shape: f32[2,8,32], index: 1, kind: input, shape index: {}]
  %s2 = inlined_call_operand.hbm [shape: f32[2,8,32], index: 2, kind: input, shape index: {}]
  %s3 = inlined_call_operand.hbm [shape: bf16[32,32], index: 3, kind: input, shape index: {}]
  %s4 = inlined_call_operand.vmem [shape: f32[1,32], index: 4, kind: input, shape index: {}]
  %s5 = inlined_call_operand.vmem [shape: bf16[32,32], index: 5, kind: input, shape index: {}]
  %s6 = inlined_call_operand.vmem [shape: f32[1,32], index: 6, kind: input, shape index: {}]
  %s7 = inlined_call_operand.hbm [shape: bf16[32,32], index: 7, kind: input, shape index: {}]
  %s8 = inlined_call_operand.vmem [shape: f32[1,32], index: 8, kind: input, shape index: {}]
  %s9 = inlined_call_operand.hbm [shape: bf16[2,8,32], index: 9, kind: output, shape index: {0}]
  %s10 = inlined_call_operand.hbm [shape: bf16[2,8,32], index: 10, kind: output, shape index: {1}]
  %s11 = inlined_call_operand.hbm [shape: bf16[2,8,32], index: 11, kind: output, shape index: {2}]
  %12 = xla_tuple %s9, %s10, %s11
  %s13 = sld [smem:[#allocation0]]
  $region105: #{tpu_custom_call.1} parent=0
    _
  %s15 = ssub.s32 1, %s13
  %s16 = scalar_select 0, %s15, %s13
  $region1: #{tpu_custom_call.1} parent=0
    #allocation2 [shape = 'u8[8192]{0}', space=vmem, size = 0x2000, scoped, tag = 'input window, operand 0']
    #allocation3 [shape = 's32[2]{0}', space=sflag, size = 0x8, scoped, tag = 'scoped memory for tpu_custom_call.1']
    #allocation4 [shape = 's32[2]{0}', space=sflag, size = 0x8, scoped, tag = 'scoped memory for tpu_custom_call.1']
    #allocation5 [shape = 'u8[8192]{0}', space=vmem, size = 0x2000, scoped, tag = 'input window, operand 1']
    #allocation6 [shape = 's32[2]{0}', space=sflag, size = 0x8, scoped, tag = 'scoped memory for tpu_custom_call.1']
    #allocation7 [shape = 'u8[8192]{0}', space=vmem, size = 0x2000, scoped, tag = 'input window, operand 2']
    #allocation8 [shape = 'u8[8192]{0}', space=vmem, size = 0x2000, scoped, tag = 'input window, operand 3, single buffered']
    #allocation9 [shape = 's32[1]{0}', space=sflag, size = 0x4, scoped, tag = 'scoped memory for tpu_custom_call.1']
    #allocation10 [shape = 'u8[8192]{0}', space=vmem, size = 0x2000, scoped, tag = 'input window, operand 7, single buffered']
    #allocation11 [shape = 'u8[4096]{0}', space=vmem, size = 0x1000, scoped, tag = 'output window, operand 0']
    #allocation12 [shape = 'u8[4096]{0}', space=vmem, size = 0x1000, scoped, tag = 'output window, operand 1']
    #allocation13 [shape = 's32[2]{0}', space=sflag, size = 0x8, scoped, tag = 'scoped memory for tpu_custom_call.1']
    #allocation14 [shape = 'u8[4096]{0}', space=vmem, size = 0x1000, scoped, tag = 'output window, operand 2']
    %17 = vsyncpa [#allocation3], 0
    %s18 = scalar_lea.sflag [#allocation3], 1
    %19 = vsyncpa %s18, 0
    %20 = vsyncpa [#allocation6], 0
    %s21 = scalar_lea.sflag [#allocation6], 1
    %22 = vsyncpa %s21, 0
    %23 = vsyncpa [#allocation9], 0
    %24 = vsyncpa [#allocation4], 0
    %s25 = scalar_lea.sflag [#allocation4], 1
    %26 = vsyncpa %s25, 0
    %27 = vsyncpa [#allocation13], 0
    %s28 = scalar_lea.sflag [#allocation13], 1
    %29 = vsyncpa %s28, 0
    loop: start=0, step=1, limit=4
    $region2: #{tpu_custom_call.1} parent=1 // loop_pre_header
      _
    $region3: #{tpu_custom_call.1} parent=1 // loop_header
      %s31 = sphi 0, %s35
      %p32 = scmp.ge.s32.totalorder %s31, 4
      %s38 = sphi 0, %s50
      %s39 = sphi 0, %s46
      %s40 = sphi 0, %s38
      %s41 = sphi 0, %s39
      %s42 = sphi 0, %s40
      %s43 = sphi 0, %s41
      %s55 = sphi 0, %s57
      %s58 = sphi 0, %s55
      %s59 = sphi 0, %s58
      %s75 = sphi 0, %s59
      %s83 = sphi 0, %s85
      %s86 = sphi 0, %s83
      %s87 = sphi 0, %s86
      %s103 = sphi 0, %s87
      %s111 = sphi 0, %s113
      %s114 = sphi 0, %s111
      %s115 = sphi 0, %s114
      %s131 = sphi 0, %s115
      %s135 = sphi 0, %s135
      %s137 = sphi 0, %s135
      %s138 = sphi 0, %s137
      %s152 = sphi 0, %s138
      %s156 = sphi 0, %s156
      %s158 = sphi 0, %s156
      %s159 = sphi 0, %s158
      %s173 = sphi 0, %s159
      %s177 = sphi 0, %s177
      %s179 = sphi 0, %s177
      %s180 = sphi 0, %s179
      %s194 = sphi 0, %s180
      %s198 = sphi 0, %s198
      %s200 = sphi 0, %s198
      %s201 = sphi 0, %s200
      %s215 = sphi 0, %s201
      %s219 = sphi 0, %s219
      %s221 = sphi 0, %s219
      %s222 = sphi 0, %s221
      %s236 = sphi 0, %s222
      %s240 = sphi 0, %s240
      %s242 = sphi 0, %s240
      %s243 = sphi 0, %s242
      %s257 = sphi 0, %s243
      %s265 = sphi 0, %s267
      %s268 = sphi 0, %s265
      %s269 = sphi 0, %s268
      %s285 = sphi 0, %s269
      %s293 = sphi 0, %s295
      %s296 = sphi 0, %s293
      %s297 = sphi 0, %s296
      %s313 = sphi 0, %s297
      %s321 = sphi 0, %s323
      %s324 = sphi 0, %s321
      %s325 = sphi 0, %s324
      %s341 = sphi 0, %s325
    $region4: #{tpu_custom_call.1} parent=1 // loop_header_branch
      %34 = sbr.rel (%p32) target = $region8
    $region5: #{tpu_custom_call.1} parent=1 // loop_body
      %s36 = ssub.s32 %s31, 1
      %s37 = ssub.s32 %s31, 2
      %s44 = sadd.s32 1, %s39
      %p45 = scmp.ge.s32.totalorder %s44, 1
      %s46 = scalar_select %p45, 0, %s44
      %s47 = sadd.s32 1, %s38
      %s48 = scalar_select %p45, %s47, %s38
      %p49 = scmp.ge.s32.totalorder %s48, 2
      %s50 = scalar_select %p49, 0, %s48
      %s51 = ssub.s32 %s38, %s50
      %s52 = ssub.s32 %s39, %s46
      %s53 = sor.u32 %s51, %s52
      %p54 = scmp.eq.s32.totalorder %s53, 0
      %s56 = sadd.s32 %s55, 1
      %s57 = scalar_select %p54, %s55, %s56
      %p60 = pneg %p54
      %p61 = scmp.eq.s32.totalorder %s31, 1
      %p62 = por %p60, %p61
      %p63 = scmp.ne.s32.totalorder %s55, %s58
      %p64 = scmp.eq.s32.totalorder %s31, 0
      %p65 = por %p63, %p64
      %p66 = scmp.ne.s32.totalorder %s55, %s58
      %p67 = scmp.eq.s32.totalorder %s36, 1
      %p68 = por %p66, %p67
      %p69 = scmp.ne.s32.totalorder %s58, %s59
      %p70 = scmp.eq.s32.totalorder %s36, 0
      %p71 = por %p69, %p70
      %p72 = scmp.ne.s32.totalorder %s58, %s59
      %p73 = scmp.eq.s32.totalorder %s37, 1
      %p74 = por %p72, %p73
      %p76 = scmp.ne.s32.totalorder %s59, %s75
      %p77 = scmp.eq.s32.totalorder %s37, 0
      %p78 = por %p76, %p77
      %s79 = ssub.s32 %s38, %s50
      %s80 = ssub.s32 %s39, %s46
      %s81 = sor.u32 %s79, %s80
      %p82 = scmp.eq.s32.totalorder %s81, 0
      %s84 = sadd.s32 %s83, 1
      %s85 = scalar_select %p82, %s83, %s84
      %p88 = pneg %p82
      %p89 = scmp.eq.s32.totalorder %s31, 1
      %p90 = por %p88, %p89
      %p91 = scmp.ne.s32.totalorder %s83, %s86
      %p92 = scmp.eq.s32.totalorder %s31, 0
      %p93 = por %p91, %p92
      %p94 = scmp.ne.s32.totalorder %s83, %s86
      %p95 = scmp.eq.s32.totalorder %s36, 1
      %p96 = por %p94, %p95
      %p97 = scmp.ne.s32.totalorder %s86, %s87
      %p98 = scmp.eq.s32.totalorder %s36, 0
      %p99 = por %p97, %p98
      %p100 = scmp.ne.s32.totalorder %s86, %s87
      %p101 = scmp.eq.s32.totalorder %s37, 1
      %p102 = por %p100, %p101
      %p104 = scmp.ne.s32.totalorder %s87, %s103
      %p105 = scmp.eq.s32.totalorder %s37, 0
      %p106 = por %p104, %p105
      %s107 = ssub.s32 %s38, %s50
      %s108 = ssub.s32 %s39, %s46
      %s109 = sor.u32 %s107, %s108
      %p110 = scmp.eq.s32.totalorder %s109, 0
      %s112 = sadd.s32 %s111, 1
      %s113 = scalar_select %p110, %s111, %s112
      %p116 = pneg %p110
      %p117 = scmp.eq.s32.totalorder %s31, 1
      %p118 = por %p116, %p117
      %p119 = scmp.ne.s32.totalorder %s111, %s114
      %p120 = scmp.eq.s32.totalorder %s31, 0
      %p121 = por %p119, %p120
      %p122 = scmp.ne.s32.totalorder %s111, %s114
      %p123 = scmp.eq.s32.totalorder %s36, 1
      %p124 = por %p122, %p123
      %p125 = scmp.ne.s32.totalorder %s114, %s115
      %p126 = scmp.eq.s32.totalorder %s36, 0
      %p127 = por %p125, %p126
      %p128 = scmp.ne.s32.totalorder %s114, %s115
      %p129 = scmp.eq.s32.totalorder %s37, 1
      %p130 = por %p128, %p129
      %p132 = scmp.ne.s32.totalorder %s115, %s131
      %p133 = scmp.eq.s32.totalorder %s37, 0
      %p134 = por %p132, %p133
      %s136 = sadd.s32 %s135, 1
      %p139 = scmp.eq.s32.totalorder %s31, 1
      %p140 = scmp.ne.s32.totalorder %s135, %s137
      %p141 = scmp.eq.s32.totalorder %s31, 0
      %p142 = por %p140, %p141
      %p143 = scmp.ne.s32.totalorder %s135, %s137
      %p144 = scmp.eq.s32.totalorder %s36, 1
      %p145 = por %p143, %p144
      %p146 = scmp.ne.s32.totalorder %s137, %s138
      %p147 = scmp.eq.s32.totalorder %s36, 0
      %p148 = por %p146, %p147
      %p149 = scmp.ne.s32.totalorder %s137, %s138
      %p150 = scmp.eq.s32.totalorder %s37, 1
      %p151 = por %p149, %p150
      %p153 = scmp.ne.s32.totalorder %s138, %s152
      %p154 = scmp.eq.s32.totalorder %s37, 0
      %p155 = por %p153, %p154
      %s157 = sadd.s32 %s156, 1
      %p160 = scmp.eq.s32.totalorder %s31, 1
      %p161 = scmp.ne.s32.totalorder %s156, %s158
      %p162 = scmp.eq.s32.totalorder %s31, 0
      %p163 = por %p161, %p162
      %p164 = scmp.ne.s32.totalorder %s156, %s158
      %p165 = scmp.eq.s32.totalorder %s36, 1
      %p166 = por %p164, %p165
      %p167 = scmp.ne.s32.totalorder %s158, %s159
      %p168 = scmp.eq.s32.totalorder %s36, 0
      %p169 = por %p167, %p168
      %p170 = scmp.ne.s32.totalorder %s158, %s159
      %p171 = scmp.eq.s32.totalorder %s37, 1
      %p172 = por %p170, %p171
      %p174 = scmp.ne.s32.totalorder %s159, %s173
      %p175 = scmp.eq.s32.totalorder %s37, 0
      %p176 = por %p174, %p175
      %s178 = sadd.s32 %s177, 1
      %p181 = scmp.eq.s32.totalorder %s31, 1
      %p182 = scmp.ne.s32.totalorder %s177, %s179
      %p183 = scmp.eq.s32.totalorder %s31, 0
      %p184 = por %p182, %p183
      %p185 = scmp.ne.s32.totalorder %s177, %s179
      %p186 = scmp.eq.s32.totalorder %s36, 1
      %p187 = por %p185, %p186
      %p188 = scmp.ne.s32.totalorder %s179, %s180
      %p189 = scmp.eq.s32.totalorder %s36, 0
      %p190 = por %p188, %p189
      %p191 = scmp.ne.s32.totalorder %s179, %s180
      %p192 = scmp.eq.s32.totalorder %s37, 1
      %p193 = por %p191, %p192
      %p195 = scmp.ne.s32.totalorder %s180, %s194
      %p196 = scmp.eq.s32.totalorder %s37, 0
      %p197 = por %p195, %p196
      %s199 = sadd.s32 %s198, 1
      %p202 = scmp.eq.s32.totalorder %s31, 1
      %p203 = scmp.ne.s32.totalorder %s198, %s200
      %p204 = scmp.eq.s32.totalorder %s31, 0
      %p205 = por %p203, %p204
      %p206 = scmp.ne.s32.totalorder %s198, %s200
      %p207 = scmp.eq.s32.totalorder %s36, 1
      %p208 = por %p206, %p207
      %p209 = scmp.ne.s32.totalorder %s200, %s201
      %p210 = scmp.eq.s32.totalorder %s36, 0
      %p211 = por %p209, %p210
      %p212 = scmp.ne.s32.totalorder %s200, %s201
      %p213 = scmp.eq.s32.totalorder %s37, 1
      %p214 = por %p212, %p213
      %p216 = scmp.ne.s32.totalorder %s201, %s215
      %p217 = scmp.eq.s32.totalorder %s37, 0
      %p218 = por %p216, %p217
      %s220 = sadd.s32 %s219, 1
      %p223 = scmp.eq.s32.totalorder %s31, 1
      %p224 = scmp.ne.s32.totalorder %s219, %s221
      %p225 = scmp.eq.s32.totalorder %s31, 0
      %p226 = por %p224, %p225
      %p227 = scmp.ne.s32.totalorder %s219, %s221
      %p228 = scmp.eq.s32.totalorder %s36, 1
      %p229 = por %p227, %p228
      %p230 = scmp.ne.s32.totalorder %s221, %s222
      %p231 = scmp.eq.s32.totalorder %s36, 0
      %p232 = por %p230, %p231
      %p233 = scmp.ne.s32.totalorder %s221, %s222
      %p234 = scmp.eq.s32.totalorder %s37, 1
      %p235 = por %p233, %p234
      %p237 = scmp.ne.s32.totalorder %s222, %s236
      %p238 = scmp.eq.s32.totalorder %s37, 0
      %p239 = por %p237, %p238
      %s241 = sadd.s32 %s240, 1
      %p244 = scmp.eq.s32.totalorder %s31, 1
      %p245 = scmp.ne.s32.totalorder %s240, %s242
      %p246 = scmp.eq.s32.totalorder %s31, 0
      %p247 = por %p245, %p246
      %p248 = scmp.ne.s32.totalorder %s240, %s242
      %p249 = scmp.eq.s32.totalorder %s36, 1
      %p250 = por %p248, %p249
      %p251 = scmp.ne.s32.totalorder %s242, %s243
      %p252 = scmp.eq.s32.totalorder %s36, 0
      %p253 = por %p251, %p252
      %p254 = scmp.ne.s32.totalorder %s242, %s243
      %p255 = scmp.eq.s32.totalorder %s37, 1
      %p256 = por %p254, %p255
      %p258 = scmp.ne.s32.totalorder %s243, %s257
      %p259 = scmp.eq.s32.totalorder %s37, 0
      %p260 = por %p258, %p259
      %s261 = ssub.s32 %s38, %s50
      %s262 = ssub.s32 %s39, %s46
      %s263 = sor.u32 %s261, %s262
      %p264 = scmp.eq.s32.totalorder %s263, 0
      %s266 = sadd.s32 %s265, 1
      %s267 = scalar_select %p264, %s265, %s266
      %p270 = pneg %p264
      %p271 = scmp.eq.s32.totalorder %s31, 1
      %p272 = por %p270, %p271
      %p273 = scmp.ne.s32.totalorder %s265, %s268
      %p274 = scmp.eq.s32.totalorder %s31, 0
      %p275 = por %p273, %p274
      %p276 = scmp.ne.s32.totalorder %s265, %s268
      %p277 = scmp.eq.s32.totalorder %s36, 1
      %p278 = por %p276, %p277
      %p279 = scmp.ne.s32.totalorder %s268, %s269
      %p280 = scmp.eq.s32.totalorder %s36, 0
      %p281 = por %p279, %p280
      %p282 = scmp.ne.s32.totalorder %s268, %s269
      %p283 = scmp.eq.s32.totalorder %s37, 1
      %p284 = por %p282, %p283
      %p286 = scmp.ne.s32.totalorder %s269, %s285
      %p287 = scmp.eq.s32.totalorder %s37, 0
      %p288 = por %p286, %p287
      %s289 = ssub.s32 %s38, %s50
      %s290 = ssub.s32 %s39, %s46
      %s291 = sor.u32 %s289, %s290
      %p292 = scmp.eq.s32.totalorder %s291, 0
      %s294 = sadd.s32 %s293, 1
      %s295 = scalar_select %p292, %s293, %s294
      %p298 = pneg %p292
      %p299 = scmp.eq.s32.totalorder %s31, 1
      %p300 = por %p298, %p299
      %p301 = scmp.ne.s32.totalorder %s293, %s296
      %p302 = scmp.eq.s32.totalorder %s31, 0
      %p303 = por %p301, %p302
      %p304 = scmp.ne.s32.totalorder %s293, %s296
      %p305 = scmp.eq.s32.totalorder %s36, 1
      %p306 = por %p304, %p305
      %p307 = scmp.ne.s32.totalorder %s296, %s297
      %p308 = scmp.eq.s32.totalorder %s36, 0
      %p309 = por %p307, %p308
      %p310 = scmp.ne.s32.totalorder %s296, %s297
      %p311 = scmp.eq.s32.totalorder %s37, 1
      %p312 = por %p310, %p311
      %p314 = scmp.ne.s32.totalorder %s297, %s313
      %p315 = scmp.eq.s32.totalorder %s37, 0
      %p316 = por %p314, %p315
      %s317 = ssub.s32 %s38, %s50
      %s318 = ssub.s32 %s39, %s46
      %s319 = sor.u32 %s317, %s318
      %p320 = scmp.eq.s32.totalorder %s319, 0
      %s322 = sadd.s32 %s321, 1
      %s323 = scalar_select %p320, %s321, %s322
      %p326 = pneg %p320
      %p327 = scmp.eq.s32.totalorder %s31, 1
      %p328 = por %p326, %p327
      %p329 = scmp.ne.s32.totalorder %s321, %s324
      %p330 = scmp.eq.s32.totalorder %s31, 0
      %p331 = por %p329, %p330
      %p332 = scmp.ne.s32.totalorder %s321, %s324
      %p333 = scmp.eq.s32.totalorder %s36, 1
      %p334 = por %p332, %p333
      %p335 = scmp.ne.s32.totalorder %s324, %s325
      %p336 = scmp.eq.s32.totalorder %s36, 0
      %p337 = por %p335, %p336
      %p338 = scmp.ne.s32.totalorder %s324, %s325
      %p339 = scmp.eq.s32.totalorder %s37, 1
      %p340 = por %p338, %p339
      %p342 = scmp.ne.s32.totalorder %s325, %s341
      %p343 = scmp.eq.s32.totalorder %s37, 0
      %p344 = por %p342, %p343
      %p345 = scmp.le.s32.totalorder 1, %s31
      %p346 = scmp.lt.s32.totalorder %s31, 3
      %p347 = pnand %p345, %p346
      %p348 = pneg %p347
      // Predicated region
      $region9: #{tpu_custom_call.1} parent=5 // pred_check
        _
      $region10: #{tpu_custom_call.1} parent=5 // pred_check_branch
        %350 = sbr.rel (%p347) target = $region12
      $region11: #{tpu_custom_call.1} parent=5 // pred_region
        %s351 = ssub.s32 %s31, 1
        // Predicated region
        $region13: #{tpu_custom_call.1} parent=11 // pred_check
          %p352 = pneg %p148
        $region14: #{tpu_custom_call.1} parent=11 // pred_check_branch
          %354 = sbr.rel (%p352) target = $region16
        $region15: #{tpu_custom_call.1} parent=11 // pred_region
          %s356 = ssub.s32 256, 256
          %357 = vsyncadd [#allocation9], %s356
          %s358 = sshll.u32 [#allocation8], 4
          %s359 = int_to_ptr.vmem [resolvable:$true] %s358
          %364 = dma.hbm_to_vmem [thread:$0]  %s3, 256, %s359, [#allocation9], 64, 64, 4
        $region16: #{tpu_custom_call.1} parent=11 // pred_fallthru
          _
        // Predicated region
        $region17: #{tpu_custom_call.1} parent=11 // pred_check
          %p365 = pneg %p169
        $region18: #{tpu_custom_call.1} parent=11 // pred_check_branch
          %367 = sbr.rel (%p365) target = $region20
        $region19: #{tpu_custom_call.1} parent=11 // pred_region
          _
        $region20: #{tpu_custom_call.1} parent=11 // pred_fallthru
          _
        // Predicated region
        $region21: #{tpu_custom_call.1} parent=11 // pred_check
          %p368 = pneg %p190
        $region22: #{tpu_custom_call.1} parent=11 // pred_check_branch
          %370 = sbr.rel (%p368) target = $region24
        $region23: #{tpu_custom_call.1} parent=11 // pred_region
          _
        $region24: #{tpu_custom_call.1} parent=11 // pred_fallthru
          _
        // Predicated region
        $region25: #{tpu_custom_call.1} parent=11 // pred_check
          %p371 = pneg %p211
        $region26: #{tpu_custom_call.1} parent=11 // pred_check_branch
          %373 = sbr.rel (%p371) target = $region28
        $region27: #{tpu_custom_call.1} parent=11 // pred_region
          _
        $region28: #{tpu_custom_call.1} parent=11 // pred_fallthru
          _
        // Predicated region
        $region29: #{tpu_custom_call.1} parent=11 // pred_check
          %p374 = pneg %p232
        $region30: #{tpu_custom_call.1} parent=11 // pred_check_branch
          %376 = sbr.rel (%p374) target = $region32
        $region31: #{tpu_custom_call.1} parent=11 // pred_region
          %s378 = ssub.s32 256, 256
          %379 = vsyncadd [#allocation9], %s378
          %s380 = sshll.u32 [#allocation10], 4
          %s381 = int_to_ptr.vmem [resolvable:$true] %s380
          %386 = dma.hbm_to_vmem [thread:$0]  %s7, 256, %s381, [#allocation9], 64, 64, 4
        $region32: #{tpu_custom_call.1} parent=11 // pred_fallthru
          _
        // Predicated region
        $region33: #{tpu_custom_call.1} parent=11 // pred_check
          %p387 = pneg %p253
        $region34: #{tpu_custom_call.1} parent=11 // pred_check_branch
          %389 = sbr.rel (%p387) target = $region36
        $region35: #{tpu_custom_call.1} parent=11 // pred_region
          _
        $region36: #{tpu_custom_call.1} parent=11 // pred_fallthru
          _
      $region12: #{tpu_custom_call.1} parent=5 // pred_fallthru
        _
      %p390 = scmp.lt.s32.totalorder %s31, 2
      // Predicated region
      $region37: #{tpu_custom_call.1} parent=5 // pred_check
        %p391 = pneg %p390
      $region38: #{tpu_custom_call.1} parent=5 // pred_check_branch
        %393 = sbr.rel (%p391) target = $region40
      $region39: #{tpu_custom_call.1} parent=5 // pred_region
        // Predicated region
        $region41: #{tpu_custom_call.1} parent=39 // pred_check
          %p394 = pneg %p65
        $region42: #{tpu_custom_call.1} parent=39 // pred_check_branch
          %396 = sbr.rel (%p394) target = $region44
        $region43: #{tpu_custom_call.1} parent=39 // pred_region
          %s397 = sand.u32 %s55, 1
          %s398 = scalar_lea.sflag [#allocation3], %s397
          %s399 = sand.u32 %s55, 1
          %s400 = smul.addr %s399, 8
          %s401 = scalar_lea.vmem [#allocation2], %s400
          %s403 = ssub.s32 128, 128
          %404 = vsyncadd %s398, %s403
          %s405 = sadd.s32 %s39, %s38
          %s406 = smul.addr %s405, 128
          %s407 = scalar_lea.hbm %s0, %s406
          %s409 = sshll.u32 %s401, 4
          %s410 = int_to_ptr.vmem [resolvable:$true] %s409
          %412 = dma.hbm_to_vmem [thread:$0]  %s407, 128, %s410, %s398
        $region44: #{tpu_custom_call.1} parent=39 // pred_fallthru
          _
        // Predicated region
        $region45: #{tpu_custom_call.1} parent=39 // pred_check
          %p413 = pneg %p93
        $region46: #{tpu_custom_call.1} parent=39 // pred_check_branch
          %415 = sbr.rel (%p413) target = $region48
        $region47: #{tpu_custom_call.1} parent=39 // pred_region
          %s416 = sand.u32 %s31, 1
          %s417 = scalar_lea.sflag [#allocation6], %s416
          %s418 = sand.u32 %s83, 1
          %s419 = smul.addr %s418, 8
          %s420 = scalar_lea.vmem [#allocation5], %s419
          %s422 = ssub.s32 128, 128
          %423 = vsyncadd %s417, %s422
          %s424 = sadd.s32 %s39, %s38
          %s425 = smul.addr %s424, 128
          %s426 = scalar_lea.hbm %s1, %s425
          %s428 = sshll.u32 %s420, 4
          %s429 = int_to_ptr.vmem [resolvable:$true] %s428
          %431 = dma.hbm_to_vmem [thread:$0]  %s426, 128, %s429, %s417
        $region48: #{tpu_custom_call.1} parent=39 // pred_fallthru
          _
        // Predicated region
        $region49: #{tpu_custom_call.1} parent=39 // pred_check
          %p432 = pneg %p121
        $region50: #{tpu_custom_call.1} parent=39 // pred_check_branch
          %434 = sbr.rel (%p432) target = $region52
        $region51: #{tpu_custom_call.1} parent=39 // pred_region
          %s435 = sand.u32 %s31, 1
          %s436 = scalar_lea.sflag [#allocation6], %s435
          %s437 = sand.u32 %s111, 1
          %s438 = smul.addr %s437, 8
          %s439 = scalar_lea.vmem [#allocation7], %s438
          %s441 = ssub.s32 128, 128
          %442 = vsyncadd %s436, %s441
          %s443 = sadd.s32 %s39, %s38
          %s444 = smul.addr %s443, 128
          %s445 = scalar_lea.hbm %s2, %s444
          %s447 = sshll.u32 %s439, 4
          %s448 = int_to_ptr.vmem [resolvable:$true] %s447
          %450 = dma.hbm_to_vmem [thread:$0]  %s445, 128, %s448, %s436
        $region52: #{tpu_custom_call.1} parent=39 // pred_fallthru
          _
      $region40: #{tpu_custom_call.1} parent=5 // pred_fallthru
        _
      %p451 = scmp.le.s32.totalorder 1, %s31
      %p452 = scmp.lt.s32.totalorder %s31, 3
      %p453 = pnand %p451, %p452
      %p454 = pneg %p453
      // Predicated region
      $region53: #{tpu_custom_call.1} parent=5 // pred_check
        _
      $region54: #{tpu_custom_call.1} parent=5 // pred_check_branch
        %456 = sbr.rel (%p453) target = $region56
      $region55: #{tpu_custom_call.1} parent=5 // pred_region
        %s457 = ssub.s32 %s31, 1
        %s458 = sand.u32 %s58, 1
        %s459 = scalar_lea.sflag [#allocation3], %s458
        %s460 = sand.u32 %s58, 1
        %s461 = smul.addr %s460, 8
        %s462 = scalar_lea.vmem [#allocation2], %s461
        // Predicated region
        $region57: #{tpu_custom_call.1} parent=55 // pred_check
          %p463 = pneg %p71
        $region58: #{tpu_custom_call.1} parent=55 // pred_check_branch
          %465 = sbr.rel (%p463) target = $region60
        $region59: #{tpu_custom_call.1} parent=55 // pred_region
          %466 = dma.done %s459, 128
        $region60: #{tpu_custom_call.1} parent=55 // pred_fallthru
          _
        %s467 = sand.u32 %s36, 1
        %s468 = scalar_lea.sflag [#allocation6], %s467
        %s469 = sand.u32 %s86, 1
        %s470 = smul.addr %s469, 8
        %s471 = scalar_lea.vmem [#allocation5], %s470
        // Predicated region
        $region61: #{tpu_custom_call.1} parent=55 // pred_check
          %p472 = pneg %p99
        $region62: #{tpu_custom_call.1} parent=55 // pred_check_branch
          %474 = sbr.rel (%p472) target = $region64
        $region63: #{tpu_custom_call.1} parent=55 // pred_region
          %475 = dma.done %s468, 128
        $region64: #{tpu_custom_call.1} parent=55 // pred_fallthru
          _
        %s476 = sand.u32 %s36, 1
        %s477 = scalar_lea.sflag [#allocation6], %s476
        %s478 = sand.u32 %s114, 1
        %s479 = smul.addr %s478, 8
        %s480 = scalar_lea.vmem [#allocation7], %s479
        // Predicated region
        $region65: #{tpu_custom_call.1} parent=55 // pred_check
          %p481 = pneg %p127
        $region66: #{tpu_custom_call.1} parent=55 // pred_check_branch
          %483 = sbr.rel (%p481) target = $region68
        $region67: #{tpu_custom_call.1} parent=55 // pred_region
          %484 = dma.done %s477, 128
        $region68: #{tpu_custom_call.1} parent=55 // pred_fallthru
          _
        // Predicated region
        $region69: #{tpu_custom_call.1} parent=55 // pred_check
          %p485 = pneg %p148
        $region70: #{tpu_custom_call.1} parent=55 // pred_check_branch
          %487 = sbr.rel (%p485) target = $region72
        $region71: #{tpu_custom_call.1} parent=55 // pred_region
          %488 = dma.done [#allocation9], 256
        $region72: #{tpu_custom_call.1} parent=55 // pred_fallthru
          _
        // Predicated region
        $region73: #{tpu_custom_call.1} parent=55 // pred_check
          %p489 = pneg %p232
        $region74: #{tpu_custom_call.1} parent=55 // pred_check_branch
          %491 = sbr.rel (%p489) target = $region76
        $region75: #{tpu_custom_call.1} parent=55 // pred_region
          %492 = dma.done [#allocation9], 256
        $region76: #{tpu_custom_call.1} parent=55 // pred_fallthru
          _
        %s493 = sand.u32 %s58, 1
        %s494 = scalar_lea.sflag [#allocation3], %s493
        %s495 = sand.u32 %s58, 1
        %s496 = smul.addr %s495, 8
        %s497 = scalar_lea.vmem [#allocation2], %s496
        %p498 = pneg %p71
        %p499 = pneg %p68
        %s500 = sand.u32 %s36, 1
        %s501 = scalar_lea.sflag [#allocation6], %s500
        %s502 = sand.u32 %s86, 1
        %s503 = smul.addr %s502, 8
        %s504 = scalar_lea.vmem [#allocation5], %s503
        %p505 = pneg %p99
        %p506 = pneg %p96
        %s507 = sand.u32 %s36, 1
        %s508 = scalar_lea.sflag [#allocation6], %s507
        %s509 = sand.u32 %s114, 1
        %s510 = smul.addr %s509, 8
        %s511 = scalar_lea.vmem [#allocation7], %s510
        %p512 = pneg %p127
        %p513 = pneg %p124
        %p514 = pneg %p148
        %p515 = pneg %p145
        %p516 = pneg %p169
        %p517 = pneg %p166
        %p518 = pneg %p190
        %p519 = pneg %p187
        %p520 = pneg %p211
        %p521 = pneg %p208
        %p522 = pneg %p232
        %p523 = pneg %p229
        %p524 = pneg %p253
        %p525 = pneg %p250
        %p526 = pneg %p281
        %p527 = pneg %p278
        %s528 = sand.u32 %s268, 1
        %s529 = scalar_lea.sflag [#allocation4], %s528
        %s530 = sand.u32 %s268, 1
        %s531 = smul.addr %s530, 4
        %s532 = scalar_lea.vmem [#allocation11], %s531
        %p533 = pneg %p309
        %p534 = pneg %p306
        %s535 = sand.u32 %s36, 1
        %s536 = scalar_lea.sflag [#allocation13], %s535
        %s537 = sand.u32 %s296, 1
        %s538 = smul.addr %s537, 4
        %s539 = scalar_lea.vmem [#allocation12], %s538
        %p540 = pneg %p337
        %p541 = pneg %p334
        %s542 = sand.u32 %s36, 1
        %s543 = scalar_lea.sflag [#allocation13], %s542
        %s544 = sand.u32 %s324, 1
        %s545 = smul.addr %s544, 4
        %s546 = scalar_lea.vmem [#allocation14], %s545
        %v548 = vld [vmem:[%s462] sm:$0xff]
        %v549 = vpack.c.bf16 %v548, %v548
        %v550 = vld [vmem:[#allocation8] sm:$0xf]
        %v551 = vld [vmem:[#allocation8 + $0x4] sm:$0xf]
        %v552 = vld [vmem:[#allocation8 + $0x8] sm:$0xf]
        %v553 = vld [vmem:[#allocation8 + $0xc] sm:$0xf]
        %v554 = vld [vmem:[%s4] sm:$0x1]
        %v556 = vlaneseq
        %v557 = vshrl.u32 %v556, 7
        %v558 = vsub.s32 0, %v557
        %v559 = vrot.slane %v554, %v558
        %v565 = vunpack.c.l.b16 %v550
        %v566 = vunpack.c.l.b16 %v551
        %v567 = vunpack.c.l.b16 %v552
        %v568 = vunpack.c.l.b16 %v553
        %v569 = vpack.c.b16 %v566, %v565
        %v570 = vpack.c.b16 %v568, %v567
        %vm573 = vcmask 261120
        %v575 = vsel %vm573, %v549, 0
        %577 = vmatprep.subr.bf16.mxu0 0
        %578 = vmatpush1.bf16.msra.mxu0 %v569
        %579 = vmatprep.subr.bf16.mxu0 0
        %580 = vmatpush1.bf16.msra.mxu0 %v570
        %581 = vmatprep.subr.bf16.mxu0 0
        %582 = vmatpush1.bf16.msra.mxu0 0
        %583 = vmatprep.subr.bf16.mxu0 0
        %584 = vmatpush1.bf16.msra.mxu0 0
        %585 = vmatprep.subr.bf16.mxu0 0
        %586 = vmatpush1.bf16.msra.mxu0 0
        %587 = vmatprep.subr.bf16.mxu0 0
        %588 = vmatpush1.bf16.msra.mxu0 0
        %589 = vmatprep.subr.bf16.mxu0 0
        %590 = vmatpush1.bf16.msra.mxu0 0
        %591 = vmatprep.subr.bf16.mxu0 0
        %592 = vmatpush1.bf16.msra.mxu0 0
        %593 = vmatprep.subr.bf16.mxu0 0
        %594 = vmatpush1.bf16.msra.mxu0 0
        %595 = vmatprep.subr.bf16.mxu0 0
        %596 = vmatpush1.bf16.msra.mxu0 0
        %597 = vmatprep.subr.bf16.mxu0 0
        %598 = vmatpush1.bf16.msra.mxu0 0
        %599 = vmatprep.subr.bf16.mxu0 0
        %600 = vmatpush1.bf16.msra.mxu0 0
        %601 = vmatprep.subr.bf16.mxu0 0
        %602 = vmatpush1.bf16.msra.mxu0 0
        %603 = vmatprep.subr.bf16.mxu0 0
        %604 = vmatpush1.bf16.msra.mxu0 0
        %605 = vmatprep.subr.bf16.mxu0 0
        %606 = vmatpush1.bf16.msra.mxu0 0
        %607 = vmatprep.subr.bf16.mxu0 0
        %608 = vmatpush1.bf16.msra.mxu0 0
        %609 = vmatprep.mubr.bf16.mxu0 0
        %610 = vmatmul.mubr.bf16.gmra.mrb[0].mxu0 %v575
        %v611 = vpop.f32.mrb[0].mxu0
        %v612 = vadd.f32 %v559, %v611
        %v613 = vpop.f32.mrb[0].mxu0
        %v614 = vpop.f32.mrb[0].mxu0
        %v615 = vpop.f32.mrb[0].mxu0
        %616 = vdwg.mxu0
        %v617 = vpack.c.bf16 %v612, %v612
        %vm618 = vcmask 257024
        %619 = vst.msk [vmem:[%s532] sm:$0xf] %vm618, %v617
        %v620 = vld [vmem:[%s471] sm:$0xff]
        %v621 = vpack.c.bf16 %v620, %v620
        %v622 = vld [vmem:[%s5] sm:$0xf]
        %v623 = vld [vmem:[%s5 + $0x4] sm:$0xf]
        %v624 = vld [vmem:[%s5 + $0x8] sm:$0xf]
        %v625 = vld [vmem:[%s5 + $0xc] sm:$0xf]
        %v626 = vld [vmem:[%s6] sm:$0x1]
        %v628 = vlaneseq
        %v629 = vshrl.u32 %v628, 7
        %v630 = vsub.s32 0, %v629
        %v631 = vrot.slane %v626, %v630
        %v637 = vunpack.c.l.b16 %v622
        %v638 = vunpack.c.l.b16 %v623
        %v639 = vunpack.c.l.b16 %v624
        %v640 = vunpack.c.l.b16 %v625
        %v641 = vpack.c.b16 %v638, %v637
        %v642 = vpack.c.b16 %v640, %v639
        %v646 = vsel %vm573, %v621, 0
        %648 = vmatprep.subr.bf16.mxu0 0
        %649 = vmatpush1.bf16.msra.mxu0 %v641
        %650 = vmatprep.subr.bf16.mxu0 0
        %651 = vmatpush1.bf16.msra.mxu0 %v642
        %652 = vmatprep.subr.bf16.mxu0 0
        %653 = vmatpush1.bf16.msra.mxu0 0
        %654 = vmatprep.subr.bf16.mxu0 0
        %655 = vmatpush1.bf16.msra.mxu0 0
        %656 = vmatprep.subr.bf16.mxu0 0
        %657 = vmatpush1.bf16.msra.mxu0 0
        %658 = vmatprep.subr.bf16.mxu0 0
        %659 = vmatpush1.bf16.msra.mxu0 0
        %660 = vmatprep.subr.bf16.mxu0 0
        %661 = vmatpush1.bf16.msra.mxu0 0
        %662 = vmatprep.subr.bf16.mxu0 0
        %663 = vmatpush1.bf16.msra.mxu0 0
        %664 = vmatprep.subr.bf16.mxu0 0
        %665 = vmatpush1.bf16.msra.mxu0 0
        %666 = vmatprep.subr.bf16.mxu0 0
        %667 = vmatpush1.bf16.msra.mxu0 0
        %668 = vmatprep.subr.bf16.mxu0 0
        %669 = vmatpush1.bf16.msra.mxu0 0
        %670 = vmatprep.subr.bf16.mxu0 0
        %671 = vmatpush1.bf16.msra.mxu0 0
        %672 = vmatprep.subr.bf16.mxu0 0
        %673 = vmatpush1.bf16.msra.mxu0 0
        %674 = vmatprep.subr.bf16.mxu0 0
        %675 = vmatpush1.bf16.msra.mxu0 0
        %676 = vmatprep.subr.bf16.mxu0 0
        %677 = vmatpush1.bf16.msra.mxu0 0
        %678 = vmatprep.subr.bf16.mxu0 0
        %679 = vmatpush1.bf16.msra.mxu0 0
        %680 = vmatprep.mubr.bf16.mxu0 0
        %681 = vmatmul.mubr.bf16.gmra.mrb[0].mxu0 %v646
        %v682 = vpop.f32.mrb[0].mxu0
        %v683 = vadd.f32 %v631, %v682
        %v684 = vpop.f32.mrb[0].mxu0
        %v685 = vpop.f32.mrb[0].mxu0
        %v686 = vpop.f32.mrb[0].mxu0
        %687 = vdwg.mxu0
        %v688 = vpack.c.bf16 %v683, %v683
        %689 = vst.msk [vmem:[%s539] sm:$0xf] %vm618, %v688
        %v690 = vld [vmem:[%s480] sm:$0xff]
        %v691 = vpack.c.bf16 %v690, %v690
        %v692 = vld [vmem:[#allocation10] sm:$0xf]
        %v693 = vld [vmem:[#allocation10 + $0x4] sm:$0xf]
        %v694 = vld [vmem:[#allocation10 + $0x8] sm:$0xf]
        %v695 = vld [vmem:[#allocation10 + $0xc] sm:$0xf]
        %v696 = vld [vmem:[%s8] sm:$0x1]
        %v698 = vlaneseq
        %v699 = vshrl.u32 %v698, 7
        %v700 = vsub.s32 0, %v699
        %v701 = vrot.slane %v696, %v700
        %v707 = vunpack.c.l.b16 %v692
        %v708 = vunpack.c.l.b16 %v693
        %v709 = vunpack.c.l.b16 %v694
        %v710 = vunpack.c.l.b16 %v695
        %v711 = vpack.c.b16 %v708, %v707
        %v712 = vpack.c.b16 %v710, %v709
        %v716 = vsel %vm573, %v691, 0
        %718 = vmatprep.subr.bf16.mxu0 0
        %719 = vmatpush1.bf16.msra.mxu0 %v711
        %720 = vmatprep.subr.bf16.mxu0 0
        %721 = vmatpush1.bf16.msra.mxu0 %v712
        %722 = vmatprep.subr.bf16.mxu0 0
        %723 = vmatpush1.bf16.msra.mxu0 0
        %724 = vmatprep.subr.bf16.mxu0 0
        %725 = vmatpush1.bf16.msra.mxu0 0
        %726 = vmatprep.subr.bf16.mxu0 0
        %727 = vmatpush1.bf16.msra.mxu0 0
        %728 = vmatprep.subr.bf16.mxu0 0
        %729 = vmatpush1.bf16.msra.mxu0 0
        %730 = vmatprep.subr.bf16.mxu0 0
        %731 = vmatpush1.bf16.msra.mxu0 0
        %732 = vmatprep.subr.bf16.mxu0 0
        %733 = vmatpush1.bf16.msra.mxu0 0
        %734 = vmatprep.subr.bf16.mxu0 0
        %735 = vmatpush1.bf16.msra.mxu0 0
        %736 = vmatprep.subr.bf16.mxu0 0
        %737 = vmatpush1.bf16.msra.mxu0 0
        %738 = vmatprep.subr.bf16.mxu0 0
        %739 = vmatpush1.bf16.msra.mxu0 0
        %740 = vmatprep.subr.bf16.mxu0 0
        %741 = vmatpush1.bf16.msra.mxu0 0
        %742 = vmatprep.subr.bf16.mxu0 0
        %743 = vmatpush1.bf16.msra.mxu0 0
        %744 = vmatprep.subr.bf16.mxu0 0
        %745 = vmatpush1.bf16.msra.mxu0 0
        %746 = vmatprep.subr.bf16.mxu0 0
        %747 = vmatpush1.bf16.msra.mxu0 0
        %748 = vmatprep.subr.bf16.mxu0 0
        %749 = vmatpush1.bf16.msra.mxu0 0
        %750 = vmatprep.mubr.bf16.mxu0 0
        %751 = vmatmul.mubr.bf16.gmra.mrb[0].mxu0 %v716
        %v752 = vpop.f32.mrb[0].mxu0
        %v753 = vadd.f32 %v701, %v752
        %v754 = vpop.f32.mrb[0].mxu0
        %v755 = vpop.f32.mrb[0].mxu0
        %v756 = vpop.f32.mrb[0].mxu0
        %757 = vdwg.mxu0
        %v758 = vpack.c.bf16 %v753, %v753
        %759 = vst.msk [vmem:[%s546] sm:$0xf] %vm618, %v758
        %s760 = sand.u32 %s268, 1
        %s761 = scalar_lea.sflag [#allocation4], %s760
        %s762 = sand.u32 %s268, 1
        %s763 = smul.addr %s762, 4
        %s764 = scalar_lea.vmem [#allocation11], %s763
        %s765 = sand.u32 %s36, 1
        %s766 = scalar_lea.sflag [#allocation13], %s765
        %s767 = sand.u32 %s296, 1
        %s768 = smul.addr %s767, 4
        %s769 = scalar_lea.vmem [#allocation12], %s768
        %s770 = sand.u32 %s36, 1
        %s771 = scalar_lea.sflag [#allocation13], %s770
        %s772 = sand.u32 %s324, 1
        %s773 = smul.addr %s772, 4
        %s774 = scalar_lea.vmem [#allocation14], %s773
        // Predicated region
        $region77: #{tpu_custom_call.1} parent=55 // pred_check
          %p775 = pneg %p278
        $region78: #{tpu_custom_call.1} parent=55 // pred_check_branch
          %777 = sbr.rel (%p775) target = $region80
        $region79: #{tpu_custom_call.1} parent=55 // pred_region
          %s779 = ssub.s32 64, 64
          %780 = vsyncadd %s761, %s779
          %s781 = sadd.s32 %s41, %s40
          %s782 = smul.addr %s781, 64
          %s783 = scalar_lea.hbm %s9, %s782
          %s785 = sshll.u32 %s764, 4
          %s786 = int_to_ptr.vmem [resolvable:$true] %s785
          %788 = dma.vmem_to_hbm [thread:$0]  %s786, 64, %s783, %s761
        $region80: #{tpu_custom_call.1} parent=55 // pred_fallthru
          _
        // Predicated region
        $region81: #{tpu_custom_call.1} parent=55 // pred_check
          %p789 = pneg %p306
        $region82: #{tpu_custom_call.1} parent=55 // pred_check_branch
          %791 = sbr.rel (%p789) target = $region84
        $region83: #{tpu_custom_call.1} parent=55 // pred_region
          %s793 = ssub.s32 64, 64
          %794 = vsyncadd %s766, %s793
          %s795 = sadd.s32 %s41, %s40
          %s796 = smul.addr %s795, 64
          %s797 = scalar_lea.hbm %s10, %s796
          %s799 = sshll.u32 %s769, 4
          %s800 = int_to_ptr.vmem [resolvable:$true] %s799
          %802 = dma.vmem_to_hbm [thread:$0]  %s800, 64, %s797, %s766
        $region84: #{tpu_custom_call.1} parent=55 // pred_fallthru
          _
        // Predicated region
        $region85: #{tpu_custom_call.1} parent=55 // pred_check
          %p803 = pneg %p334
        $region86: #{tpu_custom_call.1} parent=55 // pred_check_branch
          %805 = sbr.rel (%p803) target = $region88
        $region87: #{tpu_custom_call.1} parent=55 // pred_region
          %s807 = ssub.s32 64, 64
          %808 = vsyncadd %s771, %s807
          %s809 = sadd.s32 %s41, %s40
          %s810 = smul.addr %s809, 64
          %s811 = scalar_lea.hbm %s11, %s810
          %s813 = sshll.u32 %s774, 4
          %s814 = int_to_ptr.vmem [resolvable:$true] %s813
          %816 = dma.vmem_to_hbm [thread:$0]  %s814, 64, %s811, %s771
        $region88: #{tpu_custom_call.1} parent=55 // pred_fallthru
          _
      $region56: #{tpu_custom_call.1} parent=5 // pred_fallthru
        _
      %p817 = scmp.le.s32.totalorder 2, %s31
      // Predicated region
      $region89: #{tpu_custom_call.1} parent=5 // pred_check
        %p818 = pneg %p817
      $region90: #{tpu_custom_call.1} parent=5 // pred_check_branch
        %820 = sbr.rel (%p818) target = $region92
      $region91: #{tpu_custom_call.1} parent=5 // pred_region
        %s821 = ssub.s32 %s31, 2
        // Predicated region
        $region93: #{tpu_custom_call.1} parent=91 // pred_check
          %p822 = pneg %p284
        $region94: #{tpu_custom_call.1} parent=91 // pred_check_branch
          %824 = sbr.rel (%p822) target = $region96
        $region95: #{tpu_custom_call.1} parent=91 // pred_region
          %s825 = sand.u32 %s269, 1
          %s826 = scalar_lea.sflag [#allocation4], %s825
          %s827 = sand.u32 %s269, 1
          %s828 = smul.addr %s827, 4
          %s829 = scalar_lea.vmem [#allocation11], %s828
          %830 = dma.done %s826, 64
        $region96: #{tpu_custom_call.1} parent=91 // pred_fallthru
          _
        // Predicated region
        $region97: #{tpu_custom_call.1} parent=91 // pred_check
          %p831 = pneg %p312
        $region98: #{tpu_custom_call.1} parent=91 // pred_check_branch
          %833 = sbr.rel (%p831) target = $region100
        $region99: #{tpu_custom_call.1} parent=91 // pred_region
          %s834 = sand.u32 %s37, 1
          %s835 = scalar_lea.sflag [#allocation13], %s834
          %s836 = sand.u32 %s297, 1
          %s837 = smul.addr %s836, 4
          %s838 = scalar_lea.vmem [#allocation12], %s837
          %839 = dma.done %s835, 64
        $region100: #{tpu_custom_call.1} parent=91 // pred_fallthru
          _
        // Predicated region
        $region101: #{tpu_custom_call.1} parent=91 // pred_check
          %p840 = pneg %p340
        $region102: #{tpu_custom_call.1} parent=91 // pred_check_branch
          %842 = sbr.rel (%p840) target = $region104
        $region103: #{tpu_custom_call.1} parent=91 // pred_region
          %s843 = sand.u32 %s37, 1
          %s844 = scalar_lea.sflag [#allocation13], %s843
          %s845 = sand.u32 %s325, 1
          %s846 = smul.addr %s845, 4
          %s847 = scalar_lea.vmem [#allocation14], %s846
          %848 = dma.done %s844, 64
        $region104: #{tpu_custom_call.1} parent=91 // pred_fallthru
          _
      $region92: #{tpu_custom_call.1} parent=5 // pred_fallthru
        _
    $region6: #{tpu_custom_call.1} parent=1 // loop_footer
      %s35 = sadd.s32 1, %s31
    $region7: #{tpu_custom_call.1} parent=1 // loop_footer_branch
      %30 = sbr.rel target = $region3
    $region8: #{tpu_custom_call.1} parent=1 // loop_exit
      _
    %849 = vsyncpa [#allocation3], 1
    %s850 = scalar_lea.sflag [#allocation3], 1
    %851 = vsyncpa %s850, 1
    %852 = vsyncpa [#allocation6], 1
    %s853 = scalar_lea.sflag [#allocation6], 1
    %854 = vsyncpa %s853, 1
    %855 = vsyncpa [#allocation9], 1
    %856 = vsyncpa [#allocation4], 1
    %s857 = scalar_lea.sflag [#allocation4], 1
    %858 = vsyncpa %s857, 1
    %859 = vsyncpa [#allocation13], 1
    %s860 = scalar_lea.sflag [#allocation13], 1
    %861 = vsyncpa %s860, 1

</llo_original>
